<compile_context>
chip_gen: v5e
topology: v5e:2x2
jax: 0.10.0
libtpu: 0.0.40
codegen_flags: <defaults>
</compile_context>

<pallas_src>
import functools

import jax
import jax.numpy as jnp
from jax import lax
from jax.experimental import pallas as pl
from jax.experimental.pallas import tpu as pltpu


# Above the 16/32 MiB scoped defaults, safely under v7x's 64 MiB physical VMEM.
_VMEM_LIMIT = 48 * 1024 * 1024


def _bandwidth_kernel(src_ref, tgt_ref, inv_bw_ref, *, kernel_mul, kernel_num):
    """Closed-form bandwidth of the concatenated batch -> inv_bw scalar (SMEM)."""
    src = src_ref[...].astype(jnp.float32)
    tgt = tgt_ref[...].astype(jnp.float32)
    n = 2 * src.shape[0]
    # sum_{i,j} ||x_i - x_j||^2 = 2*N*sum_i||x_i||^2 - 2*||sum_i x_i||^2
    s2 = jnp.sum(src * src) + jnp.sum(tgt * tgt)
    m = jnp.sum(src, axis=0, keepdims=True) + jnp.sum(tgt, axis=0, keepdims=True)
    sum_l2 = 2.0 * float(n) * s2 - 2.0 * jnp.sum(m * m)
    bandwidth = sum_l2 / float(n * n - n)
    bandwidth = bandwidth / (kernel_mul ** (kernel_num // 2))
    # NOTE: if source == target, bandwidth -> 0 and inv_bw is inf — matches the module.
    inv_bw_ref[0, 0] = 1.0 / bandwidth


def _mmd_tile_kernel(inv_bw_ref, lhs_ref, rhs_ref, out_ref, *, kernel_mul, kernel_num):
    i = pl.program_id(0)   # row tile
    b = pl.program_id(1)   # block: 0 = SS, 1 = ST, 2 = TT
    j = pl.program_id(2)   # col tile

    @pl.when(jnp.logical_and(b == 0, j == 0))
    def _init():
        out_ref[...] = jnp.zeros_like(out_ref)

    lhs = lhs_ref[...]                                   # (TM, D), native dtype
    rhs = rhs_ref[...]                                   # (TN, D), native dtype
    lhs_f = lhs.astype(jnp.float32)
    rhs_f = rhs.astype(jnp.float32)
    ln = jnp.sum(lhs_f * lhs_f, axis=1, keepdims=True)   # (TM, 1)
    rn = jnp.sum(rhs_f * rhs_f, axis=1, keepdims=True)   # (TN, 1)

    # Gram tile: contract axis 1 of both operands — no transpose in the MXU feed path.
    dn = (((1,), (1,)), ((), ()))
    g = lax.dot_general(lhs, rhs, dn, preferred_element_type=jnp.float32)  # (TM, TN)

    # Squared distances; clamp Gram-form cancellation negatives and zero the true
    # diagonal (same-set blocks SS/TT, on-diagonal tile) to match the reference.
    l2 = jnp.maximum(ln + rn.T - 2.0 * g, 0.0)
    rows = lax.broadcasted_iota(jnp.int32, l2.shape, 0)
    cols = lax.broadcasted_iota(jnp.int32, l2.shape, 1)
    on_diag_tile = jnp.logical_and(b != 1, i == j)
    l2 = jnp.where(jnp.logical_and(on_diag_tile, rows == cols), 0.0, l2)

    inv_bw = inv_bw_ref[0, 0]

    # Multi-scale RBF, scalar-accumulated: K_s = exp(-l2 * inv_bw * kernel_mul**(-s)).
    if kernel_mul == 2.0:
        # One EUP exp (widest bandwidth, best conditioned); each narrower scale is an
        # elementwise square of the previous one (VPU only).
        k = jnp.exp(l2 * (-(kernel_mul ** (-(kernel_num - 1))) * inv_bw))
        acc = jnp.sum(k)
        for _ in range(kernel_num - 1):
            k = k * k
            acc = acc + jnp.sum(k)
    else:
        acc = None
        for s in range(kernel_num):
            term = jnp.sum(jnp.exp(l2 * (-(kernel_mul ** (-s)) * inv_bw)))
            acc = term if acc is None else acc + term

    # loss = (sum Kss + sum Ktt - 2*sum Kst) / B^2 ; the /B^2 happens in the wrapper.
    weight = jnp.where(b == 1, -2.0, 1.0)
    out_ref[...] += weight * acc            # scalar broadcast over the (8,128) partial tile


def _pick_tile(batch):
    """Largest tile (multiple of 8, <= 512) dividing batch; else one full-extent tile."""
    for t in (512, 256, 128, 64, 32, 16, 8):
        if batch % t == 0:
            return t
    # TODO(synk): pad ragged batch sizes to a multiple of 8 (masking padded rows out of
    #             the kernel sums) instead of falling back to a single full tile.
    return batch


def mmd_loss_rbf(source, target, *, kernel_mul=2.0, kernel_num=5):
    """MMDLoss.forward with kernel_type='rbf', fix_sigma=None."""
    assert source.shape == target.shape and source.ndim == 2
    batch, dim = source.shape

    # ---- Pass 1: bandwidth -> inv_bw (1,1) f32 in SMEM. ----
    # TODO(synk): tile this pass over rows if batch*dim ever exceeds VMEM.
    inv_bw = pl.pallas_call(
        functools.partial(_bandwidth_kernel, kernel_mul=float(kernel_mul),
                          kernel_num=int(kernel_num)),
        out_shape=jax.ShapeDtypeStruct((1, 1), jnp.float32),
        in_specs=[pl.BlockSpec(memory_space=pltpu.MemorySpace.VMEM),
                  pl.BlockSpec(memory_space=pltpu.MemorySpace.VMEM)],
        out_specs=pl.BlockSpec(memory_space=pltpu.MemorySpace.SMEM),
        compiler_params=pltpu.CompilerParams(vmem_limit_bytes=_VMEM_LIMIT),
    )(source, target)

    # ---- Pass 2: tiled kernel-sum reduction over the three BxB blocks. ----
    tile = _pick_tile(batch)
    n_tiles = batch // tile
    stacked = jnp.stack([source, target], axis=0)        # (2, B, D): 0 = src, 1 = tgt

    partials = pl.pallas_call(
        functools.partial(_mmd_tile_kernel, kernel_mul=float(kernel_mul),
                          kernel_num=int(kernel_num)),
        out_shape=jax.ShapeDtypeStruct((n_tiles, 8, 128), jnp.float32),
        grid=(n_tiles, 3, n_tiles),
        in_specs=[
            # inv_bw scalar, whole array resident in SMEM.
            pl.BlockSpec(memory_space=pltpu.MemorySpace.SMEM),
            # LHS tile: src for SS/ST (b=0,1), tgt for TT (b=2); independent of j,
            # so the (TM, D) tile stays resident while columns stream.
            pl.BlockSpec((None, tile, dim), lambda i, b, j: (b // 2, i, 0)),
            # RHS tile: src for SS (b=0), tgt for ST/TT (b=1,2).
            pl.BlockSpec((None, tile, dim), lambda i, b, j: ((b + 1) // 2, j, 0)),
        ],
        # Per-row-tile partial sums: block index depends only on the 'parallel' axis,
        # revisited (accumulated) across the two 'arbitrary' reduction axes.
        out_specs=pl.BlockSpec((None, 8, 128), lambda i, b, j: (i, 0, 0)),
        compiler_params=pltpu.CompilerParams(
            dimension_semantics=("parallel", "arbitrary", "arbitrary"),
            vmem_limit_bytes=_VMEM_LIMIT),
    )(inv_bw, stacked, stacked)

    return jnp.sum(partials[:, 0, 0]) / float(batch * batch)


def _mmd_loss_rbf_ref(source, target, *, kernel_mul=2.0, kernel_num=5):
    """Pure-JAX reference matching the PyTorch module (diff-based distances)."""
    b = source.shape[0]
    total = jnp.concatenate([source, target], axis=0).astype(jnp.float32)
    n = total.shape[0]
    diff = total[None, :, :] - total[:, None, :]
    l2 = jnp.sum(diff * diff, axis=2)
    bandwidth = jnp.sum(l2) / float(n * n - n)
    bandwidth = bandwidth / (kernel_mul ** (kernel_num // 2))
    kern = sum(jnp.exp(-l2 / (bandwidth * (kernel_mul ** i))) for i in range(kernel_num))
    return (jnp.mean(kern[:b, :b]) + jnp.mean(kern[b:, b:])
            - jnp.mean(kern[:b, b:]) - jnp.mean(kern[b:, :b]))


if __name__ == "__main__":
    key = jax.random.PRNGKey(0)
    k1, k2 = jax.random.split(key)
    batch, hidden = 8, 128
    # Shift the target distribution a bit so the loss is non-trivial.
    source = jax.random.normal(k1, (batch, hidden), dtype=jnp.float32)
    target = jax.random.normal(k2, (batch, hidden), dtype=jnp.float32) + 0.5

    loss = mmd_loss_rbf(source, target)
    jax.block_until_ready(loss)

    ref = _mmd_loss_rbf_ref(source, target)
    assert jnp.allclose(loss, ref, rtol=1e-3, atol=1e-4), (loss, ref)
    print("KERNEL_OK")
</pallas_src>

<mosaic_0001>
module attributes {stable_mosaic.version = 11 : i64} {
  func.func @_bandwidth_kernel(%arg0: memref<8x128xf32, #tpu.memory_space<vmem>>, %arg1: memref<8x128xf32, #tpu.memory_space<vmem>>, %arg2: memref<1x1xf32, #tpu.memory_space<smem>>) attributes {dimension_semantics = [], scalar_prefetch = 0 : i64, scratch_operands = 0 : i64, tpu.core_type = #tpu.core_type<tc>} {
    %c0 = arith.constant 0 : index
    %c0_0 = arith.constant 0 : index
    %0 = vector.load %arg0[%c0, %c0_0] : memref<8x128xf32, #tpu.memory_space<vmem>>, vector<8x128xf32>
    %c0_1 = arith.constant 0 : index
    %c0_2 = arith.constant 0 : index
    %1 = vector.load %arg1[%c0_1, %c0_2] : memref<8x128xf32, #tpu.memory_space<vmem>>, vector<8x128xf32>
    %2 = arith.mulf %0, %0 : vector<8x128xf32>
    %3 = vector.shape_cast %2 : vector<8x128xf32> to vector<1x8x128xf32>
    %cst = arith.constant dense<0.000000e+00> : vector<1xf32>
    %4 = vector.multi_reduction <add>, %3, %cst [1, 2] : vector<1x8x128xf32> to vector<1xf32>
    %5 = vector.shape_cast %4 : vector<1xf32> to vector<1x1x1xf32>
    %6 = vector.extract %5[0, 0, 0] : f32 from vector<1x1x1xf32>
    %7 = arith.mulf %1, %1 : vector<8x128xf32>
    %8 = vector.shape_cast %7 : vector<8x128xf32> to vector<1x8x128xf32>
    %cst_3 = arith.constant dense<0.000000e+00> : vector<1xf32>
    %9 = vector.multi_reduction <add>, %8, %cst_3 [1, 2] : vector<1x8x128xf32> to vector<1xf32>
    %10 = vector.shape_cast %9 : vector<1xf32> to vector<1x1x1xf32>
    %11 = vector.extract %10[0, 0, 0] : f32 from vector<1x1x1xf32>
    %12 = arith.addf %6, %11 : f32
    %cst_4 = arith.constant dense<0.000000e+00> : vector<128xf32>
    %13 = vector.multi_reduction <add>, %0, %cst_4 [0] : vector<8x128xf32> to vector<128xf32>
    %14 = vector.shape_cast %13 : vector<128xf32> to vector<1x128xf32>
    %cst_5 = arith.constant dense<0.000000e+00> : vector<128xf32>
    %15 = vector.multi_reduction <add>, %1, %cst_5 [0] : vector<8x128xf32> to vector<128xf32>
    %16 = vector.shape_cast %15 : vector<128xf32> to vector<1x128xf32>
    %17 = arith.addf %14, %16 : vector<1x128xf32>
    %cst_6 = arith.constant 3.200000e+01 : f32
    %18 = arith.mulf %cst_6, %12 : f32
    %19 = arith.mulf %17, %17 : vector<1x128xf32>
    %20 = vector.shape_cast %19 : vector<1x128xf32> to vector<1x1x128xf32>
    %cst_7 = arith.constant dense<0.000000e+00> : vector<1xf32>
    %21 = vector.multi_reduction <add>, %20, %cst_7 [1, 2] : vector<1x1x128xf32> to vector<1xf32>
    %22 = vector.shape_cast %21 : vector<1xf32> to vector<1x1x1xf32>
    %23 = vector.extract %22[0, 0, 0] : f32 from vector<1x1x1xf32>
    %cst_8 = arith.constant 2.000000e+00 : f32
    %24 = arith.mulf %cst_8, %23 : f32
    %25 = arith.subf %18, %24 : f32
    %cst_9 = arith.constant 2.400000e+02 : f32
    %26 = arith.divf %25, %cst_9 : f32
    %cst_10 = arith.constant 4.000000e+00 : f32
    %27 = arith.divf %26, %cst_10 : f32
    %cst_11 = arith.constant 1.000000e+00 : f32
    %28 = arith.divf %cst_11, %27 : f32
    %c0_12 = arith.constant 0 : index
    %c0_13 = arith.constant 0 : index
    %29 = memref.load %arg2[%c0_12, %c0_13] : memref<1x1xf32, #tpu.memory_space<smem>>
    memref.store %28, %arg2[%c0_12, %c0_13] : memref<1x1xf32, #tpu.memory_space<smem>>
    return
  }
}

</mosaic_0001>

<llo_original>
// kernel: tpu_custom_call.1
$region0: #{tpu_custom_call.1}
  #allocation0 [shape = 'u32[]', space=smem, size = 0x4, offset = 0x4, fixed_abs, tag = 'smem constant byte address 0x4 - core index']
  #allocation1 [shape = 'u32[72,128]{1,0:T(1,128)}', space=vmem, size = 0x9000, scoped, tag = 'internal scratch']
  %s0 = inlined_call_operand.hbm [shape: f32[8,128], index: 0, kind: input, shape index: {}]
  %s1 = inlined_call_operand.hbm [shape: f32[8,128], index: 1, kind: input, shape index: {}]
  %s2 = inlined_call_operand.hbm [shape: f32[1,1], index: 2, kind: output, shape index: {}]
  %s3 = sld [smem:[#allocation0]]
  $region26: #{tpu_custom_call.1} parent=0
    _
  %s5 = ssub.s32 1, %s3
  %s6 = scalar_select 0, %s5, %s3
  $region1: #{tpu_custom_call.1} parent=0
    #allocation2 [shape = 'u8[4096]{0}', space=vmem, size = 0x1000, scoped, tag = 'input window, operand 0, single buffered']
    #allocation3 [shape = 's32[1]{0}', space=sflag, size = 0x4, scoped, tag = 'scoped memory for tpu_custom_call.1']
    #allocation4 [shape = 's32[1]{0}', space=sflag, size = 0x4, scoped, tag = 'scoped memory for tpu_custom_call.1']
    #allocation5 [shape = 'u8[4096]{0}', space=vmem, size = 0x1000, scoped, tag = 'input window, operand 1, single buffered']
    #allocation6 [shape = 's32[1]{0}', space=sflag, size = 0x4, scoped, tag = 'scoped memory for tpu_custom_call.1']
    #allocation7 [shape = 'u8[512]{0}', space=smem, size = 0x200, scoped, tag = 'output window, operand 0, single buffered']
    %7 = vsyncpa [#allocation3], 0
    %8 = vsyncpa [#allocation6], 0
    %9 = vsyncpa [#allocation4], 0
    // Predicated region
    $region2: #{tpu_custom_call.1} parent=1 // pred_check
      _
    $region3: #{tpu_custom_call.1} parent=1 // pred_check_branch
      %11 = sbr.rel (0) target = $region5
    $region4: #{tpu_custom_call.1} parent=1 // pred_region
      %13 = vsyncadd [#allocation3], 0
      %s15 = sshll.u32 %s0, 4
      %s16 = int_to_ptr.hbm [resolvable:$true] %s15
      %s17 = sshll.u32 [#allocation2], 4
      %s18 = int_to_ptr.vmem [resolvable:$true] %s17
      %20 = dma.hbm_to_vmem [thread:$0]  %s16, 128, %s18, [#allocation3]
    $region5: #{tpu_custom_call.1} parent=1 // pred_fallthru
      _
    // Predicated region
    $region6: #{tpu_custom_call.1} parent=1 // pred_check
      _
    $region7: #{tpu_custom_call.1} parent=1 // pred_check_branch
      %22 = sbr.rel (0) target = $region9
    $region8: #{tpu_custom_call.1} parent=1 // pred_region
      %24 = vsyncadd [#allocation6], 0
      %s26 = sshll.u32 %s1, 4
      %s27 = int_to_ptr.hbm [resolvable:$true] %s26
      %s28 = sshll.u32 [#allocation5], 4
      %s29 = int_to_ptr.vmem [resolvable:$true] %s28
      %31 = dma.hbm_to_vmem [thread:$0]  %s27, 128, %s29, [#allocation6]
    $region9: #{tpu_custom_call.1} parent=1 // pred_fallthru
      _
    // Predicated region
    $region10: #{tpu_custom_call.1} parent=1 // pred_check
      _
    $region11: #{tpu_custom_call.1} parent=1 // pred_check_branch
      %33 = sbr.rel (0) target = $region13
    $region12: #{tpu_custom_call.1} parent=1 // pred_region
      %35 = dma.done [#allocation3], 128
    $region13: #{tpu_custom_call.1} parent=1 // pred_fallthru
      _
    // Predicated region
    $region14: #{tpu_custom_call.1} parent=1 // pred_check
      _
    $region15: #{tpu_custom_call.1} parent=1 // pred_check_branch
      %37 = sbr.rel (0) target = $region17
    $region16: #{tpu_custom_call.1} parent=1 // pred_region
      %39 = dma.done [#allocation6], 128
    $region17: #{tpu_custom_call.1} parent=1 // pred_fallthru
      _
    %v40 = vld [vmem:[#allocation2] sm:$0xff]
    %v41 = vld [vmem:[#allocation5] sm:$0xff]
    %v42 = vmul.f32 %v40, %v40
    %43 = vadd.xlane.f32.xlu0 %v42
    %v44 = vpop.xlane.xlu0 %43
    %v45 = vrot.slane %v44, 4
    %v46 = vadd.f32 %v44, %v45
    %v47 = vrot.slane %v46, 2
    %v48 = vadd.f32 %v46, %v47
    %v49 = vrot.slane %v48, 1
    %v50 = vadd.f32 %v48, %v49
    %s51 = vtos %v50
    %v52 = vmul.f32 %v41, %v41
    %53 = vadd.xlane.f32.xlu0 %v52
    %v54 = vpop.xlane.xlu0 %53
    %v55 = vrot.slane %v54, 4
    %v56 = vadd.f32 %v54, %v55
    %v57 = vrot.slane %v56, 2
    %v58 = vadd.f32 %v56, %v57
    %v59 = vrot.slane %v58, 1
    %v60 = vadd.f32 %v58, %v59
    %s61 = vtos %v60
    %s62 = sadd.f32 %s51, %s61
    %v63 = vrot.slane %v40, 4
    %v64 = vadd.f32 %v40, %v63
    %v65 = vrot.slane %v64, 2
    %v66 = vadd.f32 %v64, %v65
    %v67 = vrot.slane %v66, 1
    %v68 = vadd.f32 %v66, %v67
    %v69 = vrot.slane %v41, 4
    %v70 = vadd.f32 %v41, %v69
    %v71 = vrot.slane %v70, 2
    %v72 = vadd.f32 %v70, %v71
    %v73 = vrot.slane %v72, 1
    %v74 = vadd.f32 %v72, %v73
    %v75 = vadd.f32 %v68, %v74
    %s76 = smul.f32 %s62, 32.0
    %v77 = vmul.f32 %v75, %v75
    %vm78 = vcmask 1040384
    %v79 = vsel %vm78, %v77, 0.0
    %80 = vadd.xlane.f32.xlu0 %v79
    %v81 = vpop.xlane.xlu0 %80
    %v82 = vrot.slane %v81, 4
    %v83 = vadd.f32 %v81, %v82
    %v84 = vrot.slane %v83, 2
    %v85 = vadd.f32 %v83, %v84
    %v86 = vrot.slane %v85, 1
    %v87 = vadd.f32 %v85, %v86
    %s88 = vtos %v87
    %s89 = smul.f32 %s88, 2.0
    %s90 = ssub.f32 %s76, %s89
    %v91 = vrcp.pop 240.0
    %v92 = vmul.f32 240.0, %v91
    %v93 = vsub.f32 1.0, %v92
    %v94 = vmul.f32 %v91, %v93
    %v95 = vadd.f32 %v91, %v94
    %vm96 = vweird.f32 %v91
    %v97 = vsel %vm96, %v91, %v95
    %s98 = vtos %v97
    %s99 = smul.f32 %s90, %s98
    %v100 = vrcp.pop 4.0
    %v101 = vmul.f32 4.0, %v100
    %v102 = vsub.f32 1.0, %v101
    %v103 = vmul.f32 %v100, %v102
    %v104 = vadd.f32 %v100, %v103
    %vm105 = vweird.f32 %v100
    %v106 = vsel %vm105, %v100, %v104
    %s107 = vtos %v106
    %s108 = smul.f32 %s99, %s107
    %v109 = vstv %s108
    %v110 = vrcp.pop %v109
    %v111 = vmul.f32 %v109, %v110
    %v112 = vsub.f32 1.0, %v111
    %v113 = vmul.f32 %v110, %v112
    %v114 = vadd.f32 %v110, %v113
    %vm115 = vweird.f32 %v109
    %vm116 = vweird.f32 %v110
    %vm117 = vmor %vm115, %vm116
    %v118 = vsel %vm117, %v110, %v114
    %v119 = vand.u32 2147483647, %v109
    %vm120 = vcmp.eq.f32.partialorder %v119, 8.507059e+37
    %v121 = vand.u32 %v109, 2147483648
    %v122 = vor.u32 1.1754944e-38, %v121
    %v123 = vsel %vm120, %v122, %v118
    %s124 = vtos %v123
    %s125 = scalar_lea.smem [#allocation7], 0
    %126 = sst [smem:[%s125]] %s124
    // Predicated region
    $region18: #{tpu_custom_call.1} parent=1 // pred_check
      _
    $region19: #{tpu_custom_call.1} parent=1 // pred_check_branch
      %128 = sbr.rel (0) target = $region21
    $region20: #{tpu_custom_call.1} parent=1 // pred_region
      %130 = vsyncadd [#allocation4], 0
      %s132 = sshll.u32 %s2, 4
      %s133 = int_to_ptr.hbm [resolvable:$true] %s132
      %135 = dma.smem_to_hbm [#allocation7], 16, %s133, [#allocation4]
    $region21: #{tpu_custom_call.1} parent=1 // pred_fallthru
      _
    // Predicated region
    $region22: #{tpu_custom_call.1} parent=1 // pred_check
      _
    $region23: #{tpu_custom_call.1} parent=1 // pred_check_branch
      %137 = sbr.rel (0) target = $region25
    $region24: #{tpu_custom_call.1} parent=1 // pred_region
      %139 = dma.done [#allocation4], 16
    $region25: #{tpu_custom_call.1} parent=1 // pred_fallthru
      _
    %140 = sfence
    %141 = vsyncpa [#allocation3], 1
    %142 = vsyncpa [#allocation6], 1
    %143 = vsyncpa [#allocation4], 1

</llo_original>
